<compile_context>
chip_gen: v6e
topology: v6e:2x2x1
jax: 0.10.0
libtpu: 0.0.40
codegen_flags: <defaults>
</compile_context>

<pallas_src>
import jax
import jax.numpy as jnp
from jax import lax
from jax.experimental import pallas as pl
from jax.experimental.pallas import tpu as pltpu

LANE = 128


def _round_up(x, m):
    return ((x + m - 1) // m) * m


def _pick_tile(n, cap):
    """Largest tile <= cap that divides n and is a multiple of 8 (or n itself)."""
    if n <= cap:
        return n
    t = (cap // 8) * 8
    while t >= 8:
        if n % t == 0:
            return t
        t -= 8
    return n


# ----------------------------------------------------------------------------
# Fused kernel: pos-add + rep_mask + encoder matmuls + masked max-pool
#               (running max over S blocks) + 3-layer FC head.
# ----------------------------------------------------------------------------
def nn4emo_fused_kernel(
        x_g_ref, x_s_ref, pos_ref, lens_ref,
        wg_ref, bg_ref, ws_ref, bs_ref,
        w1g_ref, w1s_ref, b1_ref,
        w2g_ref, w2s_ref, w2h_ref, b2_ref,
        wo_ref, bo_ref,
        out_ref,
        pg_acc, ps_acc):
    s_idx = pl.program_id(1)
    n_s = pl.num_programs(1)

    @pl.when(s_idx == 0)
    def _():
        pg_acc[...] = jnp.zeros_like(pg_acc)
        ps_acc[...] = jnp.zeros_like(ps_acc)

    tb, ts, D = x_g_ref.shape
    E = wg_ref.shape[1]

    pos = pos_ref[...]                               # (ts, D) bf16
    xg = x_g_ref[...] + pos[None, :, :]              # (tb, ts, D) bf16
    xs = x_s_ref[...] + pos[None, :, :]

    # One large 2-D MXU matmul per stream (bf16 x bf16 -> f32 accumulate).
    hg = jnp.dot(xg.reshape(tb * ts, D), wg_ref[...],
                 preferred_element_type=jnp.float32).reshape(tb, ts, E)
    hs = jnp.dot(xs.reshape(tb * ts, D), ws_ref[...],
                 preferred_element_type=jnp.float32).reshape(tb, ts, E)

    # rep_mask (get_rep_mask semantics): 1.0 where token index < length else 0.
    tok = lax.broadcasted_iota(jnp.int32, (tb, ts), 1) + s_idx * ts
    mask = (tok < lens_ref[...]).astype(jnp.float32)[:, :, None]     # (tb, ts, 1)

    # bias + ReLU + multiplicative mask fused into one expression.
    hg = jnp.maximum(hg + bg_ref[...], 0.0) * mask
    hs = jnp.maximum(hs + bs_ref[...], 0.0) * mask

    pg_acc[...] = jnp.maximum(pg_acc[...], jnp.max(hg, axis=1))       # (tb, E)
    ps_acc[...] = jnp.maximum(ps_acc[...], jnp.max(hs, axis=1))       # (tb, E)

    @pl.when(s_idx == n_s - 1)
    def _():
        pg = pg_acc[...]
        ps = ps_acc[...]
        # fc1(s), s = [pg, ps]: concat avoided by row-splitting fc1_w.
        h1 = jnp.maximum(
            jnp.dot(pg, w1g_ref[...], preferred_element_type=jnp.float32)
            + jnp.dot(ps, w1s_ref[...], preferred_element_type=jnp.float32)
            + b1_ref[...], 0.0)
        # fc2([s, h1]) = pg @ w2_g + ps @ w2_s + h1 @ w2_h + b2
        h2 = jnp.maximum(
            jnp.dot(pg, w2g_ref[...], preferred_element_type=jnp.float32)
            + jnp.dot(ps, w2s_ref[...], preferred_element_type=jnp.float32)
            + jnp.dot(h1, w2h_ref[...], preferred_element_type=jnp.float32)
            + b2_ref[...], 0.0)
        out_ref[...] = (jnp.dot(h2, wo_ref[...],
                                preferred_element_type=jnp.float32)
                        + bo_ref[...])


# ----------------------------------------------------------------------------
# Wrapper
# ----------------------------------------------------------------------------
def nn4emo_forward(seq, lens, params, *, tile_b=None, tile_s=None):
    B, S = seq.shape
    glove = params['glove_emb']                       # (V, D) bf16
    ss = params['ss_emb']                             # (V, D) bf16
    D = glove.shape[1]
    E = params['enc_wg'].shape[1]
    C = params['fc_out_w'].shape[1]
    CPAD = _round_up(max(C, LANE), LANE)

    # Embedding lookups (bf16 -> half the gather + DMA bytes).
    x_g = jnp.take(glove, seq, axis=0)                # (B, S, D) bf16
    x_s = jnp.take(ss, seq, axis=0)                   # (B, S, D) bf16
    pos = params['pos_emb'][:S]                       # (S, D) bf16
    lens2d = lens.reshape(B, 1).astype(jnp.int32)     # (B, 1)

    tb = tile_b if tile_b is not None else _pick_tile(B, 64)
    ts = tile_s if tile_s is not None else _pick_tile(S, 512)
    nb, ns = B // tb, S // ts

    # Encoder weights in bf16 for the MXU; biases stay f32.
    wg = params['enc_wg'].astype(jnp.bfloat16)
    ws = params['enc_ws'].astype(jnp.bfloat16)
    bg, bs = params['enc_bg'], params['enc_bs']

    # Row-split FC weights so the kernel never concatenates along lanes.
    w1 = params['fc1_w']                              # (2E, E)
    w1g, w1s = w1[:E], w1[E:]
    w2 = params['fc2_w']                              # (3E, E)
    w2g, w2s, w2h = w2[:E], w2[E:2 * E], w2[2 * E:]
    wo_pad = jnp.zeros((E, CPAD), jnp.float32).at[:, :C].set(params['fc_out_w'])
    bo_pad = jnp.zeros((1, CPAD), jnp.float32).at[:, :C].set(params['fc_out_b'])

    def full_spec(a):
        nd = a.ndim
        return pl.BlockSpec(a.shape, lambda b, s, _nd=nd: (0,) * _nd)

    in_specs = [
        pl.BlockSpec((tb, ts, D), lambda b, s: (b, s, 0)),     # x_g
        pl.BlockSpec((tb, ts, D), lambda b, s: (b, s, 0)),     # x_s
        pl.BlockSpec((ts, D), lambda b, s: (s, 0)),            # pos
        pl.BlockSpec((tb, 1), lambda b, s: (b, 0)),            # lens
        full_spec(wg), full_spec(bg), full_spec(ws), full_spec(bs),
        full_spec(w1g), full_spec(w1s), full_spec(params['fc1_b']),
        full_spec(w2g), full_spec(w2s), full_spec(w2h), full_spec(params['fc2_b']),
        full_spec(wo_pad), full_spec(bo_pad),
    ]
    out_spec = pl.BlockSpec((tb, CPAD), lambda b, s: (b, 0))

    out_pad = pl.pallas_call(
        nn4emo_fused_kernel,
        out_shape=jax.ShapeDtypeStruct((B, CPAD), jnp.float32),
        grid=(nb, ns),
        in_specs=in_specs,
        out_specs=out_spec,
        scratch_shapes=[pltpu.VMEM((tb, E), jnp.float32),
                        pltpu.VMEM((tb, E), jnp.float32)],
        compiler_params=pltpu.CompilerParams(
            dimension_semantics=("parallel", "arbitrary"),
            vmem_limit_bytes=48 * 1024 * 1024),
    )(x_g, x_s, pos, lens2d,
      wg, bg, ws, bs,
      w1g, w1s, params['fc1_b'],
      w2g, w2s, w2h, params['fc2_b'],
      wo_pad, bo_pad)

    return out_pad[:, :C]


# ----------------------------------------------------------------------------
# Deterministic parameter construction + example run
# ----------------------------------------------------------------------------
def make_params(key, vocab, word_dim, d_e, class_size):
    ks = jax.random.split(key, 12)
    u = lambda k, shape, scale=0.1: (jax.random.normal(k, shape, jnp.float32) * scale)
    fc_dim = 2 * d_e   # args.simple_encoder == True branch
    return dict(
        glove_emb=u(ks[0], (vocab, word_dim)).astype(jnp.bfloat16),
        ss_emb=u(ks[1], (vocab, word_dim)).astype(jnp.bfloat16),
        pos_emb=jax.random.uniform(ks[2], (512, word_dim),
                                   jnp.float32).astype(jnp.bfloat16),
        enc_wg=u(ks[3], (word_dim, d_e)),
        enc_bg=u(ks[4], (1, d_e)),
        enc_ws=u(ks[5], (word_dim, d_e)),
        enc_bs=u(ks[6], (1, d_e)),
        fc1_w=u(ks[7], (fc_dim, d_e)),
        fc1_b=u(ks[8], (1, d_e)),
        fc2_w=u(ks[9], (fc_dim + d_e, d_e)),
        fc2_b=u(ks[10], (1, d_e)),
        fc_out_w=u(ks[11], (d_e, class_size)),
        fc_out_b=jnp.zeros((1, class_size), jnp.float32),
    )


if __name__ == "__main__":
    B, S = 2, 8
    vocab, word_dim = 50, 32
    d_e, class_size = 32, 4

    key = jax.random.PRNGKey(0)
    k_param, k_seq = jax.random.split(key)

    params = make_params(k_param, vocab, word_dim, d_e, class_size)
    seq = jax.random.randint(k_seq, (B, S), 0, vocab, dtype=jnp.int32)
    lens = jnp.array([S, 5], dtype=jnp.int32)

    out = nn4emo_forward(seq, lens, params)
    out = jax.block_until_ready(out)
    assert out.shape == (B, class_size), out.shape
    assert out.dtype == jnp.float32
    print("KERNEL_OK")
</pallas_src>

<mosaic_0001>
module attributes {stable_mosaic.version = 11 : i64} {
  func.func @nn4emo_fused_kernel(%arg0: i32, %arg1: i32, %arg2: memref<2x8x32xbf16, #tpu.memory_space<vmem>>, %arg3: memref<2x8x32xbf16, #tpu.memory_space<vmem>>, %arg4: memref<8x32xbf16, #tpu.memory_space<vmem>>, %arg5: memref<2x1xi32, #tpu.memory_space<vmem>>, %arg6: memref<32x32xbf16, #tpu.memory_space<vmem>>, %arg7: memref<1x32xf32, #tpu.memory_space<vmem>>, %arg8: memref<32x32xbf16, #tpu.memory_space<vmem>>, %arg9: memref<1x32xf32, #tpu.memory_space<vmem>>, %arg10: memref<32x32xf32, #tpu.memory_space<vmem>>, %arg11: memref<32x32xf32, #tpu.memory_space<vmem>>, %arg12: memref<1x32xf32, #tpu.memory_space<vmem>>, %arg13: memref<32x32xf32, #tpu.memory_space<vmem>>, %arg14: memref<32x32xf32, #tpu.memory_space<vmem>>, %arg15: memref<32x32xf32, #tpu.memory_space<vmem>>, %arg16: memref<1x32xf32, #tpu.memory_space<vmem>>, %arg17: memref<32x128xf32, #tpu.memory_space<vmem>>, %arg18: memref<1x128xf32, #tpu.memory_space<vmem>>, %arg19: memref<2x128xf32, #tpu.memory_space<vmem>>, %arg20: memref<2x32xf32, #tpu.memory_space<vmem>>, %arg21: memref<2x32xf32, #tpu.memory_space<vmem>>) attributes {dimension_semantics = [#tpu.dimension_semantics<parallel>, #tpu.dimension_semantics<arbitrary>], iteration_bounds = array<i64: 1, 1>, scalar_prefetch = 0 : i64, scratch_operands = 2 : i64, tpu.core_type = #tpu.core_type<tc>, window_params = [{transform_indices = @transform_0, window_bounds = array<i64: 2, 8, 32>}, {transform_indices = @transform_1, window_bounds = array<i64: 2, 8, 32>}, {transform_indices = @transform_2, window_bounds = array<i64: 8, 32>}, {transform_indices = @transform_3, window_bounds = array<i64: 2, 1>}, {pipeline_mode = #tpu.pipeline_mode<synchronous>, transform_indices = @transform_4, window_bounds = array<i64: 32, 32>}, {pipeline_mode = #tpu.pipeline_mode<synchronous>, transform_indices = @transform_5, window_bounds = array<i64: 1, 32>}, {pipeline_mode = #tpu.pipeline_mode<synchronous>, transform_indices = @transform_6, window_bounds = array<i64: 32, 32>}, {pipeline_mode = #tpu.pipeline_mode<synchronous>, transform_indices = @transform_7, window_bounds = array<i64: 1, 32>}, {pipeline_mode = #tpu.pipeline_mode<synchronous>, transform_indices = @transform_8, window_bounds = array<i64: 32, 32>}, {pipeline_mode = #tpu.pipeline_mode<synchronous>, transform_indices = @transform_9, window_bounds = array<i64: 32, 32>}, {pipeline_mode = #tpu.pipeline_mode<synchronous>, transform_indices = @transform_10, window_bounds = array<i64: 1, 32>}, {pipeline_mode = #tpu.pipeline_mode<synchronous>, transform_indices = @transform_11, window_bounds = array<i64: 32, 32>}, {pipeline_mode = #tpu.pipeline_mode<synchronous>, transform_indices = @transform_12, window_bounds = array<i64: 32, 32>}, {pipeline_mode = #tpu.pipeline_mode<synchronous>, transform_indices = @transform_13, window_bounds = array<i64: 32, 32>}, {pipeline_mode = #tpu.pipeline_mode<synchronous>, transform_indices = @transform_14, window_bounds = array<i64: 1, 32>}, {pipeline_mode = #tpu.pipeline_mode<synchronous>, transform_indices = @transform_15, window_bounds = array<i64: 32, 128>}, {pipeline_mode = #tpu.pipeline_mode<synchronous>, transform_indices = @transform_16, window_bounds = array<i64: 1, 128>}, {transform_indices = @transform_17, window_bounds = array<i64: 2, 128>}]} {
    %c0_i32 = arith.constant 0 : i32
    %0 = arith.cmpi eq, %arg1, %c0_i32 : i32
    %1 = arith.extui %0 : i1 to i32
    %c0_i32_0 = arith.constant 0 : i32
    %2 = arith.cmpi ne, %1, %c0_i32_0 : i32
    scf.if %2 {
      %cst_33 = arith.constant 0.000000e+00 : f32
      %57 = vector.broadcast %cst_33 : f32 to vector<2x32xf32>
      %c0_34 = arith.constant 0 : index
      %c0_35 = arith.constant 0 : index
      %58 = vector.load %arg20[%c0_34, %c0_35] : memref<2x32xf32, #tpu.memory_space<vmem>>, vector<2x32xf32>
      tpu.vector_store %arg20[%c0_34, %c0_35], %57 {strides = array<i32>} : memref<2x32xf32, #tpu.memory_space<vmem>>, vector<2x32xf32>,
      %cst_36 = arith.constant 0.000000e+00 : f32
      %59 = vector.broadcast %cst_36 : f32 to vector<2x32xf32>
      %c0_37 = arith.constant 0 : index
      %c0_38 = arith.constant 0 : index
      %60 = vector.load %arg21[%c0_37, %c0_38] : memref<2x32xf32, #tpu.memory_space<vmem>>, vector<2x32xf32>
      tpu.vector_store %arg21[%c0_37, %c0_38], %59 {strides = array<i32>} : memref<2x32xf32, #tpu.memory_space<vmem>>, vector<2x32xf32>,
    } else {
    }
    %c0 = arith.constant 0 : index
    %c0_1 = arith.constant 0 : index
    %3 = vector.load %arg4[%c0, %c0_1] : memref<8x32xbf16, #tpu.memory_space<vmem>>, vector<8x32xbf16>
    %c0_2 = arith.constant 0 : index
    %c0_3 = arith.constant 0 : index
    %c0_4 = arith.constant 0 : index
    %4 = vector.load %arg2[%c0_2, %c0_3, %c0_4] : memref<2x8x32xbf16, #tpu.memory_space<vmem>>, vector<2x8x32xbf16>
    %5 = vector.shape_cast %3 : vector<8x32xbf16> to vector<1x8x32xbf16>
    %6 = vector.broadcast %5 : vector<1x8x32xbf16> to vector<2x8x32xbf16>
    %7 = arith.addf %4, %6 : vector<2x8x32xbf16>
    %c0_5 = arith.constant 0 : index
    %c0_6 = arith.constant 0 : index
    %c0_7 = arith.constant 0 : index
    %8 = vector.load %arg3[%c0_5, %c0_6, %c0_7] : memref<2x8x32xbf16, #tpu.memory_space<vmem>>, vector<2x8x32xbf16>
    %9 = vector.shape_cast %3 : vector<8x32xbf16> to vector<1x8x32xbf16>
    %10 = vector.broadcast %9 : vector<1x8x32xbf16> to vector<2x8x32xbf16>
    %11 = arith.addf %8, %10 : vector<2x8x32xbf16>
    %12 = vector.shape_cast %7 : vector<2x8x32xbf16> to vector<16x32xbf16>
    %c0_8 = arith.constant 0 : index
    %c0_9 = arith.constant 0 : index
    %13 = vector.load %arg6[%c0_8, %c0_9] : memref<32x32xbf16, #tpu.memory_space<vmem>>, vector<32x32xbf16>
    %cst = arith.constant dense<0.000000e+00> : vector<16x32xf32>
    %14 = tpu.matmul %12, %13, %cst {dimension_numbers = #tpu.dot_dimension_numbers<[1], [0], [0], [1], [0, 0, 1, 1], [], []>} : vector<16x32xbf16>, vector<32x32xbf16>, vector<16x32xf32> -> vector<16x32xf32>
    %15 = vector.shape_cast %14 : vector<16x32xf32> to vector<2x8x32xf32>
    %16 = vector.shape_cast %11 : vector<2x8x32xbf16> to vector<16x32xbf16>
    %c0_10 = arith.constant 0 : index
    %c0_11 = arith.constant 0 : index
    %17 = vector.load %arg8[%c0_10, %c0_11] : memref<32x32xbf16, #tpu.memory_space<vmem>>, vector<32x32xbf16>
    %cst_12 = arith.constant dense<0.000000e+00> : vector<16x32xf32>
    %18 = tpu.matmul %16, %17, %cst_12 {dimension_numbers = #tpu.dot_dimension_numbers<[1], [0], [0], [1], [0, 0, 1, 1], [], []>} : vector<16x32xbf16>, vector<32x32xbf16>, vector<16x32xf32> -> vector<16x32xf32>
    %19 = vector.shape_cast %18 : vector<16x32xf32> to vector<2x8x32xf32>
    %20 = tpu.iota {dimensions = array<i32: 1>} : vector<2x8xi32>
    %c8_i32 = arith.constant 8 : i32
    %21 = arith.muli %arg1, %c8_i32 : i32
    %22 = vector.broadcast %21 : i32 to vector<2x8xi32>
    %23 = arith.addi %20, %22 : vector<2x8xi32>
    %c0_13 = arith.constant 0 : index
    %c0_14 = arith.constant 0 : index
    %24 = vector.load %arg5[%c0_13, %c0_14] : memref<2x1xi32, #tpu.memory_space<vmem>>, vector<2x1xi32>
    %25 = vector.broadcast %24 : vector<2x1xi32> to vector<2x8xi32>
    %26 = arith.cmpi slt, %23, %25 : vector<2x8xi32>
    %27 = arith.extui %26 : vector<2x8xi1> to vector<2x8xi32>
    %28 = arith.sitofp %27 : vector<2x8xi32> to vector<2x8xf32>
    %29 = vector.shape_cast %28 : vector<2x8xf32> to vector<2x8x1xf32>
    %c0_15 = arith.constant 0 : index
    %c0_16 = arith.constant 0 : index
    %30 = vector.load %arg7[%c0_15, %c0_16] : memref<1x32xf32, #tpu.memory_space<vmem>>, vector<1x32xf32>
    %31 = vector.shape_cast %30 : vector<1x32xf32> to vector<1x1x32xf32>
    %32 = vector.broadcast %31 : vector<1x1x32xf32> to vector<2x8x32xf32>
    %33 = arith.addf %15, %32 : vector<2x8x32xf32>
    %cst_17 = arith.constant 0.000000e+00 : f32
    %34 = vector.broadcast %cst_17 : f32 to vector<2x8x32xf32>
    %35 = arith.maximumf %33, %34 : vector<2x8x32xf32>
    %36 = vector.broadcast %29 : vector<2x8x1xf32> to vector<2x8x32xf32>
    %37 = arith.mulf %35, %36 : vector<2x8x32xf32>
    %c0_18 = arith.constant 0 : index
    %c0_19 = arith.constant 0 : index
    %38 = vector.load %arg9[%c0_18, %c0_19] : memref<1x32xf32, #tpu.memory_space<vmem>>, vector<1x32xf32>
    %39 = vector.shape_cast %38 : vector<1x32xf32> to vector<1x1x32xf32>
    %40 = vector.broadcast %39 : vector<1x1x32xf32> to vector<2x8x32xf32>
    %41 = arith.addf %19, %40 : vector<2x8x32xf32>
    %cst_20 = arith.constant 0.000000e+00 : f32
    %42 = vector.broadcast %cst_20 : f32 to vector<2x8x32xf32>
    %43 = arith.maximumf %41, %42 : vector<2x8x32xf32>
    %44 = vector.broadcast %29 : vector<2x8x1xf32> to vector<2x8x32xf32>
    %45 = arith.mulf %43, %44 : vector<2x8x32xf32>
    %c0_21 = arith.constant 0 : index
    %c0_22 = arith.constant 0 : index
    %46 = vector.load %arg20[%c0_21, %c0_22] : memref<2x32xf32, #tpu.memory_space<vmem>>, vector<2x32xf32>
    %cst_23 = arith.constant dense<0xFF800000> : vector<2x32xf32>
    %47 = vector.multi_reduction <maximumf>, %37, %cst_23 [1] : vector<2x8x32xf32> to vector<2x32xf32>
    %48 = arith.maximumf %46, %47 : vector<2x32xf32>
    %c0_24 = arith.constant 0 : index
    %c0_25 = arith.constant 0 : index
    %49 = vector.load %arg20[%c0_24, %c0_25] : memref<2x32xf32, #tpu.memory_space<vmem>>, vector<2x32xf32>
    tpu.vector_store %arg20[%c0_24, %c0_25], %48 {strides = array<i32>} : memref<2x32xf32, #tpu.memory_space<vmem>>, vector<2x32xf32>,
    %c0_26 = arith.constant 0 : index
    %c0_27 = arith.constant 0 : index
    %50 = vector.load %arg21[%c0_26, %c0_27] : memref<2x32xf32, #tpu.memory_space<vmem>>, vector<2x32xf32>
    %cst_28 = arith.constant dense<0xFF800000> : vector<2x32xf32>
    %51 = vector.multi_reduction <maximumf>, %45, %cst_28 [1] : vector<2x8x32xf32> to vector<2x32xf32>
    %52 = arith.maximumf %50, %51 : vector<2x32xf32>
    %c0_29 = arith.constant 0 : index
    %c0_30 = arith.constant 0 : index
    %53 = vector.load %arg21[%c0_29, %c0_30] : memref<2x32xf32, #tpu.memory_space<vmem>>, vector<2x32xf32>
    tpu.vector_store %arg21[%c0_29, %c0_30], %52 {strides = array<i32>} : memref<2x32xf32, #tpu.memory_space<vmem>>, vector<2x32xf32>,
    %c0_i32_31 = arith.constant 0 : i32
    %54 = arith.cmpi eq, %arg1, %c0_i32_31 : i32
    %55 = arith.extui %54 : i1 to i32
    %c0_i32_32 = arith.constant 0 : i32
    %56 = arith.cmpi ne, %55, %c0_i32_32 : i32
    scf.if %56 {
      %c0_33 = arith.constant 0 : index
      %c0_34 = arith.constant 0 : index
      %57 = vector.load %arg20[%c0_33, %c0_34] : memref<2x32xf32, #tpu.memory_space<vmem>>, vector<2x32xf32>
      %c0_35 = arith.constant 0 : index
      %c0_36 = arith.constant 0 : index
      %58 = vector.load %arg21[%c0_35, %c0_36] : memref<2x32xf32, #tpu.memory_space<vmem>>, vector<2x32xf32>
      %c0_37 = arith.constant 0 : index
      %c0_38 = arith.constant 0 : index
      %59 = vector.load %arg10[%c0_37, %c0_38] : memref<32x32xf32, #tpu.memory_space<vmem>>, vector<32x32xf32>
      %cst_39 = arith.constant dense<0.000000e+00> : vector<2x32xf32>
      %60 = tpu.matmul %57, %59, %cst_39 {dimension_numbers = #tpu.dot_dimension_numbers<[1], [0], [0], [1], [0, 0, 1, 1], [], []>} : vector<2x32xf32>, vector<32x32xf32>, vector<2x32xf32> -> vector<2x32xf32>
      %c0_40 = arith.constant 0 : index
      %c0_41 = arith.constant 0 : index
      %61 = vector.load %arg11[%c0_40, %c0_41] : memref<32x32xf32, #tpu.memory_space<vmem>>, vector<32x32xf32>
      %cst_42 = arith.constant dense<0.000000e+00> : vector<2x32xf32>
      %62 = tpu.matmul %58, %61, %cst_42 {dimension_numbers = #tpu.dot_dimension_numbers<[1], [0], [0], [1], [0, 0, 1, 1], [], []>} : vector<2x32xf32>, vector<32x32xf32>, vector<2x32xf32> -> vector<2x32xf32>
      %63 = arith.addf %60, %62 : vector<2x32xf32>
      %c0_43 = arith.constant 0 : index
      %c0_44 = arith.constant 0 : index
      %64 = vector.load %arg12[%c0_43, %c0_44] : memref<1x32xf32, #tpu.memory_space<vmem>>, vector<1x32xf32>
      %65 = vector.broadcast %64 : vector<1x32xf32> to vector<2x32xf32>
      %66 = arith.addf %63, %65 : vector<2x32xf32>
      %cst_45 = arith.constant 0.000000e+00 : f32
      %67 = vector.broadcast %cst_45 : f32 to vector<2x32xf32>
      %68 = arith.maximumf %66, %67 : vector<2x32xf32>
      %c0_46 = arith.constant 0 : index
      %c0_47 = arith.constant 0 : index
      %69 = vector.load %arg13[%c0_46, %c0_47] : memref<32x32xf32, #tpu.memory_space<vmem>>, vector<32x32xf32>
      %cst_48 = arith.constant dense<0.000000e+00> : vector<2x32xf32>
      %70 = tpu.matmul %57, %69, %cst_48 {dimension_numbers = #tpu.dot_dimension_numbers<[1], [0], [0], [1], [0, 0, 1, 1], [], []>} : vector<2x32xf32>, vector<32x32xf32>, vector<2x32xf32> -> vector<2x32xf32>
      %c0_49 = arith.constant 0 : index
      %c0_50 = arith.constant 0 : index
      %71 = vector.load %arg14[%c0_49, %c0_50] : memref<32x32xf32, #tpu.memory_space<vmem>>, vector<32x32xf32>
      %cst_51 = arith.constant dense<0.000000e+00> : vector<2x32xf32>
      %72 = tpu.matmul %58, %71, %cst_51 {dimension_numbers = #tpu.dot_dimension_numbers<[1], [0], [0], [1], [0, 0, 1, 1], [], []>} : vector<2x32xf32>, vector<32x32xf32>, vector<2x32xf32> -> vector<2x32xf32>
      %73 = arith.addf %70, %72 : vector<2x32xf32>
      %c0_52 = arith.constant 0 : index
      %c0_53 = arith.constant 0 : index
      %74 = vector.load %arg15[%c0_52, %c0_53] : memref<32x32xf32, #tpu.memory_space<vmem>>, vector<32x32xf32>
      %cst_54 = arith.constant dense<0.000000e+00> : vector<2x32xf32>
      %75 = tpu.matmul %68, %74, %cst_54 {dimension_numbers = #tpu.dot_dimension_numbers<[1], [0], [0], [1], [0, 0, 1, 1], [], []>} : vector<2x32xf32>, vector<32x32xf32>, vector<2x32xf32> -> vector<2x32xf32>
      %76 = arith.addf %73, %75 : vector<2x32xf32>
      %c0_55 = arith.constant 0 : index
      %c0_56 = arith.constant 0 : index
      %77 = vector.load %arg16[%c0_55, %c0_56] : memref<1x32xf32, #tpu.memory_space<vmem>>, vector<1x32xf32>
      %78 = vector.broadcast %77 : vector<1x32xf32> to vector<2x32xf32>
      %79 = arith.addf %76, %78 : vector<2x32xf32>
      %cst_57 = arith.constant 0.000000e+00 : f32
      %80 = vector.broadcast %cst_57 : f32 to vector<2x32xf32>
      %81 = arith.maximumf %79, %80 : vector<2x32xf32>
      %c0_58 = arith.constant 0 : index
      %c0_59 = arith.constant 0 : index
      %82 = vector.load %arg17[%c0_58, %c0_59] : memref<32x128xf32, #tpu.memory_space<vmem>>, vector<32x128xf32>
      %cst_60 = arith.constant dense<0.000000e+00> : vector<2x128xf32>
      %83 = tpu.matmul %81, %82, %cst_60 {dimension_numbers = #tpu.dot_dimension_numbers<[1], [0], [0], [1], [0, 0, 1, 1], [], []>} : vector<2x32xf32>, vector<32x128xf32>, vector<2x128xf32> -> vector<2x128xf32>
      %c0_61 = arith.constant 0 : index
      %c0_62 = arith.constant 0 : index
      %84 = vector.load %arg18[%c0_61, %c0_62] : memref<1x128xf32, #tpu.memory_space<vmem>>, vector<1x128xf32>
      %85 = vector.broadcast %84 : vector<1x128xf32> to vector<2x128xf32>
      %86 = arith.addf %83, %85 : vector<2x128xf32>
      %c0_63 = arith.constant 0 : index
      %c0_64 = arith.constant 0 : index
      %87 = vector.load %arg19[%c0_63, %c0_64] : memref<2x128xf32, #tpu.memory_space<vmem>>, vector<2x128xf32>
      tpu.vector_store %arg19[%c0_63, %c0_64], %86 {strides = array<i32>} : memref<2x128xf32, #tpu.memory_space<vmem>>, vector<2x128xf32>,
    } else {
    }
    return
  }
  func.func @transform_0(%arg0: i32, %arg1: i32) -> (i32, i32, i32) {
    %c0_i32 = arith.constant 0 : i32
    %c0_i32_0 = arith.constant 0 : i32
    return %arg0, %arg1, %c0_i32 : i32, i32, i32
  }
  func.func @transform_1(%arg0: i32, %arg1: i32) -> (i32, i32, i32) {
    %c0_i32 = arith.constant 0 : i32
    %c0_i32_0 = arith.constant 0 : i32
    return %arg0, %arg1, %c0_i32 : i32, i32, i32
  }
  func.func @transform_2(%arg0: i32, %arg1: i32) -> (i32, i32) {
    %c0_i32 = arith.constant 0 : i32
    %c0_i32_0 = arith.constant 0 : i32
    return %arg1, %c0_i32 : i32, i32
  }
  func.func @transform_3(%arg0: i32, %arg1: i32) -> (i32, i32) {
    %c0_i32 = arith.constant 0 : i32
    %c0_i32_0 = arith.constant 0 : i32
    return %arg0, %c0_i32 : i32, i32
  }
  func.func @transform_4(%arg0: i32, %arg1: i32) -> (i32, i32) {
    %c0_i32 = arith.constant 0 : i32
    %c0_i32_0 = arith.constant 0 : i32
    %c0_i32_1 = arith.constant 0 : i32
    return %c0_i32, %c0_i32_0 : i32, i32
  }
  func.func @transform_5(%arg0: i32, %arg1: i32) -> (i32, i32) {
    %c0_i32 = arith.constant 0 : i32
    %c0_i32_0 = arith.constant 0 : i32
    %c0_i32_1 = arith.constant 0 : i32
    return %c0_i32, %c0_i32_0 : i32, i32
  }
  func.func @transform_6(%arg0: i32, %arg1: i32) -> (i32, i32) {
    %c0_i32 = arith.constant 0 : i32
    %c0_i32_0 = arith.constant 0 : i32
    %c0_i32_1 = arith.constant 0 : i32
    return %c0_i32, %c0_i32_0 : i32, i32
  }
  func.func @transform_7(%arg0: i32, %arg1: i32) -> (i32, i32) {
    %c0_i32 = arith.constant 0 : i32
    %c0_i32_0 = arith.constant 0 : i32
    %c0_i32_1 = arith.constant 0 : i32
    return %c0_i32, %c0_i32_0 : i32, i32
  }
  func.func @transform_8(%arg0: i32, %arg1: i32) -> (i32, i32) {
    %c0_i32 = arith.constant 0 : i32
    %c0_i32_0 = arith.constant 0 : i32
    %c0_i32_1 = arith.constant 0 : i32
    return %c0_i32, %c0_i32_0 : i32, i32
  }
  func.func @transform_9(%arg0: i32, %arg1: i32) -> (i32, i32) {
    %c0_i32 = arith.constant 0 : i32
    %c0_i32_0 = arith.constant 0 : i32
    %c0_i32_1 = arith.constant 0 : i32
    return %c0_i32, %c0_i32_0 : i32, i32
  }
  func.func @transform_10(%arg0: i32, %arg1: i32) -> (i32, i32) {
    %c0_i32 = arith.constant 0 : i32
    %c0_i32_0 = arith.constant 0 : i32
    %c0_i32_1 = arith.constant 0 : i32
    return %c0_i32, %c0_i32_0 : i32, i32
  }
  func.func @transform_11(%arg0: i32, %arg1: i32) -> (i32, i32) {
    %c0_i32 = arith.constant 0 : i32
    %c0_i32_0 = arith.constant 0 : i32
    %c0_i32_1 = arith.constant 0 : i32
    return %c0_i32, %c0_i32_0 : i32, i32
  }
  func.func @transform_12(%arg0: i32, %arg1: i32) -> (i32, i32) {
    %c0_i32 = arith.constant 0 : i32
    %c0_i32_0 = arith.constant 0 : i32
    %c0_i32_1 = arith.constant 0 : i32
    return %c0_i32, %c0_i32_0 : i32, i32
  }
  func.func @transform_13(%arg0: i32, %arg1: i32) -> (i32, i32) {
    %c0_i32 = arith.constant 0 : i32
    %c0_i32_0 = arith.constant 0 : i32
    %c0_i32_1 = arith.constant 0 : i32
    return %c0_i32, %c0_i32_0 : i32, i32
  }
  func.func @transform_14(%arg0: i32, %arg1: i32) -> (i32, i32) {
    %c0_i32 = arith.constant 0 : i32
    %c0_i32_0 = arith.constant 0 : i32
    %c0_i32_1 = arith.constant 0 : i32
    return %c0_i32, %c0_i32_0 : i32, i32
  }
  func.func @transform_15(%arg0: i32, %arg1: i32) -> (i32, i32) {
    %c0_i32 = arith.constant 0 : i32
    %c0_i32_0 = arith.constant 0 : i32
    %c0_i32_1 = arith.constant 0 : i32
    return %c0_i32, %c0_i32_0 : i32, i32
  }
  func.func @transform_16(%arg0: i32, %arg1: i32) -> (i32, i32) {
    %c0_i32 = arith.constant 0 : i32
    %c0_i32_0 = arith.constant 0 : i32
    %c0_i32_1 = arith.constant 0 : i32
    return %c0_i32, %c0_i32_0 : i32, i32
  }
  func.func @transform_17(%arg0: i32, %arg1: i32) -> (i32, i32) {
    %c0_i32 = arith.constant 0 : i32
    %c0_i32_0 = arith.constant 0 : i32
    return %arg0, %c0_i32 : i32, i32
  }
}

</mosaic_0001>

<llo_original>
// kernel: tpu_custom_call.1
$region0: #{tpu_custom_call.1}
  #allocation0 [shape = 'u32[]', space=smem, size = 0x4, offset = 0x4, fixed_abs, tag = 'smem constant byte address 0x4 - core index']
  #allocation1 [shape = 'u32[144,128]{1,0:T(1,128)}', space=vmem, size = 0x12000, scoped, tag = 'internal scratch']
  #allocation2 [shape = 'f32[2,32]{1,0:T(2,128)}', space=vmem, size = 0x400, scoped, tag = 'scratch operand']
  #allocation3 [shape = 'f32[2,32]{1,0:T(2,128)}', space=vmem, size = 0x400, scoped, tag = 'scratch operand']
  %s0 = inlined_call_operand.hbm [shape: bf16[2,8,32], index: 0, kind: input, shape index: {}]
  %s1 = inlined_call_operand.hbm [shape: bf16[2,8,32], index: 1, kind: input, shape index: {}]
  %s2 = inlined_call_operand.vmem [shape: bf16[8,32], index: 2, kind: input, shape index: {}]
  %s3 = inlined_call_operand.vmem [shape: s32[2,1], index: 3, kind: input, shape index: {}]
  %s4 = inlined_call_operand.hbm [shape: bf16[32,32], index: 4, kind: input, shape index: {}]
  %s5 = inlined_call_operand.vmem [shape: f32[1,32], index: 5, kind: input, shape index: {}]
  %s6 = inlined_call_operand.hbm [shape: bf16[32,32], index: 6, kind: input, shape index: {}]
  %s7 = inlined_call_operand.vmem [shape: f32[1,32], index: 7, kind: input, shape index: {}]
  %s8 = inlined_call_operand.hbm [shape: f32[32,32], index: 8, kind: input, shape index: {}]
  %s9 = inlined_call_operand.hbm [shape: f32[32,32], index: 9, kind: input, shape index: {}]
  %s10 = inlined_call_operand.vmem [shape: f32[1,32], index: 10, kind: input, shape index: {}]
  %s11 = inlined_call_operand.hbm [shape: f32[32,32], index: 11, kind: input, shape index: {}]
  %s12 = inlined_call_operand.hbm [shape: f32[32,32], index: 12, kind: input, shape index: {}]
  %s13 = inlined_call_operand.hbm [shape: f32[32,32], index: 13, kind: input, shape index: {}]
  %s14 = inlined_call_operand.vmem [shape: f32[1,32], index: 14, kind: input, shape index: {}]
  %s15 = inlined_call_operand.hbm [shape: f32[32,128], index: 15, kind: input, shape index: {}]
  %s16 = inlined_call_operand.vmem [shape: f32[1,128], index: 16, kind: input, shape index: {}]
  %s17 = inlined_call_operand.hbm [shape: f32[2,128], index: 17, kind: output, shape index: {}]
  %s18 = sld [smem:[#allocation0]]
  $region126: #{tpu_custom_call.1} parent=0
    _
  %s20 = ssub.s32 1, %s18
  %s21 = scalar_select 0, %s20, %s18
  $region1: #{tpu_custom_call.1} parent=0
    #allocation4 [shape = 'u8[4096]{0}', space=vmem, size = 0x1000, scoped, tag = 'input window, operand 0, single buffered']
    #allocation5 [shape = 's32[1]{0}', space=sflag, size = 0x4, scoped, tag = 'scoped memory for tpu_custom_call.1']
    #allocation6 [shape = 's32[1]{0}', space=sflag, size = 0x4, scoped, tag = 'scoped memory for tpu_custom_call.1']
    #allocation7 [shape = 'u8[4096]{0}', space=vmem, size = 0x1000, scoped, tag = 'input window, operand 1, single buffered']
    #allocation8 [shape = 's32[1]{0}', space=sflag, size = 0x4, scoped, tag = 'scoped memory for tpu_custom_call.1']
    #allocation9 [shape = 'u8[8192]{0}', space=vmem, size = 0x2000, scoped, tag = 'input window, operand 4, single buffered']
    #allocation10 [shape = 'u8[8192]{0}', space=vmem, size = 0x2000, scoped, tag = 'input window, operand 6, single buffered']
    #allocation11 [shape = 's32[1]{0}', space=sflag, size = 0x4, scoped, tag = 'scoped memory for tpu_custom_call.1']
    #allocation12 [shape = 'u8[16384]{0}', space=vmem, size = 0x4000, scoped, tag = 'input window, operand 8, single buffered']
    #allocation13 [shape = 'u8[16384]{0}', space=vmem, size = 0x4000, scoped, tag = 'input window, operand 9, single buffered']
    #allocation14 [shape = 's32[1]{0}', space=sflag, size = 0x4, scoped, tag = 'scoped memory for tpu_custom_call.1']
    #allocation15 [shape = 'u8[16384]{0}', space=vmem, size = 0x4000, scoped, tag = 'input window, operand 11, single buffered']
    #allocation16 [shape = 'u8[16384]{0}', space=vmem, size = 0x4000, scoped, tag = 'input window, operand 12, single buffered']
    #allocation17 [shape = 's32[1]{0}', space=sflag, size = 0x4, scoped, tag = 'scoped memory for tpu_custom_call.1']
    #allocation18 [shape = 'u8[16384]{0}', space=vmem, size = 0x4000, scoped, tag = 'input window, operand 13, single buffered']
    #allocation19 [shape = 'u8[16384]{0}', space=vmem, size = 0x4000, scoped, tag = 'input window, operand 15, single buffered']
    #allocation20 [shape = 's32[1]{0}', space=sflag, size = 0x4, scoped, tag = 'scoped memory for tpu_custom_call.1']
    #allocation21 [shape = 'u8[1024]{0}', space=vmem, size = 0x400, scoped, tag = 'output window, operand 0, single buffered']
    %22 = vsyncpa [#allocation5], 0
    %23 = vsyncpa [#allocation8], 0
    %24 = vsyncpa [#allocation11], 0
    %25 = vsyncpa [#allocation14], 0
    %26 = vsyncpa [#allocation17], 0
    %27 = vsyncpa [#allocation20], 0
    %28 = vsyncpa [#allocation6], 0
    // Predicated region
    $region2: #{tpu_custom_call.1} parent=1 // pred_check
      _
    $region3: #{tpu_custom_call.1} parent=1 // pred_check_branch
      %30 = sbr.rel (0) target = $region5
    $region4: #{tpu_custom_call.1} parent=1 // pred_region
      %s32 = ssub.s32 128, 128
      %33 = vsyncadd [#allocation5], %s32
      %s34 = sshll.u32 [#allocation4], 4
      %s35 = int_to_ptr.vmem [resolvable:$true] %s34
      %40 = dma.hbm_to_vmem [thread:$0]  %s0, 128, %s35, [#allocation5], 64, 64, 4
    $region5: #{tpu_custom_call.1} parent=1 // pred_fallthru
      _
    // Predicated region
    $region6: #{tpu_custom_call.1} parent=1 // pred_check
      _
    $region7: #{tpu_custom_call.1} parent=1 // pred_check_branch
      %42 = sbr.rel (0) target = $region9
    $region8: #{tpu_custom_call.1} parent=1 // pred_region
      %s44 = ssub.s32 128, 128
      %45 = vsyncadd [#allocation8], %s44
      %s46 = sshll.u32 [#allocation7], 4
      %s47 = int_to_ptr.vmem [resolvable:$true] %s46
      %52 = dma.hbm_to_vmem [thread:$0]  %s1, 128, %s47, [#allocation8], 64, 64, 4
    $region9: #{tpu_custom_call.1} parent=1 // pred_fallthru
      _
    // Predicated region
    $region10: #{tpu_custom_call.1} parent=1 // pred_check
      _
    $region11: #{tpu_custom_call.1} parent=1 // pred_check_branch
      %54 = sbr.rel (0) target = $region13
    $region12: #{tpu_custom_call.1} parent=1 // pred_region
      _
    $region13: #{tpu_custom_call.1} parent=1 // pred_fallthru
      _
    // Predicated region
    $region14: #{tpu_custom_call.1} parent=1 // pred_check
      _
    $region15: #{tpu_custom_call.1} parent=1 // pred_check_branch
      %56 = sbr.rel (0) target = $region17
    $region16: #{tpu_custom_call.1} parent=1 // pred_region
      _
    $region17: #{tpu_custom_call.1} parent=1 // pred_fallthru
      _
    // Predicated region
    $region18: #{tpu_custom_call.1} parent=1 // pred_check
      _
    $region19: #{tpu_custom_call.1} parent=1 // pred_check_branch
      %58 = sbr.rel (0) target = $region21
    $region20: #{tpu_custom_call.1} parent=1 // pred_region
      %s60 = ssub.s32 256, 256
      %61 = vsyncadd [#allocation8], %s60
      %s62 = sshll.u32 [#allocation9], 4
      %s63 = int_to_ptr.vmem [resolvable:$true] %s62
      %68 = dma.hbm_to_vmem [thread:$0]  %s4, 256, %s63, [#allocation8], 64, 64, 4
    $region21: #{tpu_custom_call.1} parent=1 // pred_fallthru
      _
    // Predicated region
    $region22: #{tpu_custom_call.1} parent=1 // pred_check
      _
    $region23: #{tpu_custom_call.1} parent=1 // pred_check_branch
      %70 = sbr.rel (0) target = $region25
    $region24: #{tpu_custom_call.1} parent=1 // pred_region
      _
    $region25: #{tpu_custom_call.1} parent=1 // pred_fallthru
      _
    // Predicated region
    $region26: #{tpu_custom_call.1} parent=1 // pred_check
      _
    $region27: #{tpu_custom_call.1} parent=1 // pred_check_branch
      %72 = sbr.rel (0) target = $region29
    $region28: #{tpu_custom_call.1} parent=1 // pred_region
      %s74 = ssub.s32 256, 256
      %75 = vsyncadd [#allocation11], %s74
      %s76 = sshll.u32 [#allocation10], 4
      %s77 = int_to_ptr.vmem [resolvable:$true] %s76
      %82 = dma.hbm_to_vmem [thread:$0]  %s6, 256, %s77, [#allocation11], 64, 64, 4
    $region29: #{tpu_custom_call.1} parent=1 // pred_fallthru
      _
    // Predicated region
    $region30: #{tpu_custom_call.1} parent=1 // pred_check
      _
    $region31: #{tpu_custom_call.1} parent=1 // pred_check_branch
      %84 = sbr.rel (0) target = $region33
    $region32: #{tpu_custom_call.1} parent=1 // pred_region
      _
    $region33: #{tpu_custom_call.1} parent=1 // pred_fallthru
      _
    // Predicated region
    $region34: #{tpu_custom_call.1} parent=1 // pred_check
      _
    $region35: #{tpu_custom_call.1} parent=1 // pred_check_branch
      %86 = sbr.rel (0) target = $region37
    $region36: #{tpu_custom_call.1} parent=1 // pred_region
      %s88 = ssub.s32 512, 512
      %89 = vsyncadd [#allocation11], %s88
      %s90 = sshll.u32 [#allocation12], 4
      %s91 = int_to_ptr.vmem [resolvable:$true] %s90
      %96 = dma.hbm_to_vmem [thread:$0]  %s8, 512, %s91, [#allocation11], 128, 128, 8
    $region37: #{tpu_custom_call.1} parent=1 // pred_fallthru
      _
    // Predicated region
    $region38: #{tpu_custom_call.1} parent=1 // pred_check
      _
    $region39: #{tpu_custom_call.1} parent=1 // pred_check_branch
      %98 = sbr.rel (0) target = $region41
    $region40: #{tpu_custom_call.1} parent=1 // pred_region
      %s100 = ssub.s32 512, 512
      %101 = vsyncadd [#allocation14], %s100
      %s102 = sshll.u32 [#allocation13], 4
      %s103 = int_to_ptr.vmem [resolvable:$true] %s102
      %108 = dma.hbm_to_vmem [thread:$0]  %s9, 512, %s103, [#allocation14], 128, 128, 8
    $region41: #{tpu_custom_call.1} parent=1 // pred_fallthru
      _
    // Predicated region
    $region42: #{tpu_custom_call.1} parent=1 // pred_check
      _
    $region43: #{tpu_custom_call.1} parent=1 // pred_check_branch
      %110 = sbr.rel (0) target = $region45
    $region44: #{tpu_custom_call.1} parent=1 // pred_region
      _
    $region45: #{tpu_custom_call.1} parent=1 // pred_fallthru
      _
    // Predicated region
    $region46: #{tpu_custom_call.1} parent=1 // pred_check
      _
    $region47: #{tpu_custom_call.1} parent=1 // pred_check_branch
      %112 = sbr.rel (0) target = $region49
    $region48: #{tpu_custom_call.1} parent=1 // pred_region
      %s114 = ssub.s32 512, 512
      %115 = vsyncadd [#allocation14], %s114
      %s116 = sshll.u32 [#allocation15], 4
      %s117 = int_to_ptr.vmem [resolvable:$true] %s116
      %122 = dma.hbm_to_vmem [thread:$0]  %s11, 512, %s117, [#allocation14], 128, 128, 8
    $region49: #{tpu_custom_call.1} parent=1 // pred_fallthru
      _
    // Predicated region
    $region50: #{tpu_custom_call.1} parent=1 // pred_check
      _
    $region51: #{tpu_custom_call.1} parent=1 // pred_check_branch
      %124 = sbr.rel (0) target = $region53
    $region52: #{tpu_custom_call.1} parent=1 // pred_region
      %s126 = ssub.s32 512, 512
      %127 = vsyncadd [#allocation17], %s126
      %s128 = sshll.u32 [#allocation16], 4
      %s129 = int_to_ptr.vmem [resolvable:$true] %s128
      %134 = dma.hbm_to_vmem [thread:$0]  %s12, 512, %s129, [#allocation17], 128, 128, 8
    $region53: #{tpu_custom_call.1} parent=1 // pred_fallthru
      _
    // Predicated region
    $region54: #{tpu_custom_call.1} parent=1 // pred_check
      _
    $region55: #{tpu_custom_call.1} parent=1 // pred_check_branch
      %136 = sbr.rel (0) target = $region57
    $region56: #{tpu_custom_call.1} parent=1 // pred_region
      %s138 = ssub.s32 512, 512
      %139 = vsyncadd [#allocation17], %s138
      %s140 = sshll.u32 [#allocation18], 4
      %s141 = int_to_ptr.vmem [resolvable:$true] %s140
      %146 = dma.hbm_to_vmem [thread:$0]  %s13, 512, %s141, [#allocation17], 128, 128, 8
    $region57: #{tpu_custom_call.1} parent=1 // pred_fallthru
      _
    // Predicated region
    $region58: #{tpu_custom_call.1} parent=1 // pred_check
      _
    $region59: #{tpu_custom_call.1} parent=1 // pred_check_branch
      %148 = sbr.rel (0) target = $region61
    $region60: #{tpu_custom_call.1} parent=1 // pred_region
      _
    $region61: #{tpu_custom_call.1} parent=1 // pred_fallthru
      _
    // Predicated region
    $region62: #{tpu_custom_call.1} parent=1 // pred_check
      _
    $region63: #{tpu_custom_call.1} parent=1 // pred_check_branch
      %150 = sbr.rel (0) target = $region65
    $region64: #{tpu_custom_call.1} parent=1 // pred_region
      %s152 = ssub.s32 512, 512
      %153 = vsyncadd [#allocation20], %s152
      %s154 = sshll.u32 [#allocation19], 4
      %s155 = int_to_ptr.vmem [resolvable:$true] %s154
      %160 = dma.hbm_to_vmem [thread:$0]  %s15, 512, %s155, [#allocation20], 128, 128, 8
    $region65: #{tpu_custom_call.1} parent=1 // pred_fallthru
      _
    // Predicated region
    $region66: #{tpu_custom_call.1} parent=1 // pred_check
      _
    $region67: #{tpu_custom_call.1} parent=1 // pred_check_branch
      %162 = sbr.rel (0) target = $region69
    $region68: #{tpu_custom_call.1} parent=1 // pred_region
      _
    $region69: #{tpu_custom_call.1} parent=1 // pred_fallthru
      _
    // Predicated region
    $region70: #{tpu_custom_call.1} parent=1 // pred_check
      _
    $region71: #{tpu_custom_call.1} parent=1 // pred_check_branch
      %164 = sbr.rel (0) target = $region73
    $region72: #{tpu_custom_call.1} parent=1 // pred_region
      %165 = dma.done [#allocation5], 128
    $region73: #{tpu_custom_call.1} parent=1 // pred_fallthru
      _
    // Predicated region
    $region74: #{tpu_custom_call.1} parent=1 // pred_check
      _
    $region75: #{tpu_custom_call.1} parent=1 // pred_check_branch
      %167 = sbr.rel (0) target = $region77
    $region76: #{tpu_custom_call.1} parent=1 // pred_region
      %168 = dma.done [#allocation8], 128
    $region77: #{tpu_custom_call.1} parent=1 // pred_fallthru
      _
    // Predicated region
    $region78: #{tpu_custom_call.1} parent=1 // pred_check
      _
    $region79: #{tpu_custom_call.1} parent=1 // pred_check_branch
      %170 = sbr.rel (0) target = $region81
    $region80: #{tpu_custom_call.1} parent=1 // pred_region
      %171 = dma.done [#allocation8], 256
    $region81: #{tpu_custom_call.1} parent=1 // pred_fallthru
      _
    // Predicated region
    $region82: #{tpu_custom_call.1} parent=1 // pred_check
      _
    $region83: #{tpu_custom_call.1} parent=1 // pred_check_branch
      %173 = sbr.rel (0) target = $region85
    $region84: #{tpu_custom_call.1} parent=1 // pred_region
      %174 = dma.done [#allocation11], 256
    $region85: #{tpu_custom_call.1} parent=1 // pred_fallthru
      _
    // Predicated region
    $region86: #{tpu_custom_call.1} parent=1 // pred_check
      _
    $region87: #{tpu_custom_call.1} parent=1 // pred_check_branch
      %176 = sbr.rel (0) target = $region89
    $region88: #{tpu_custom_call.1} parent=1 // pred_region
      %177 = dma.done [#allocation11], 512
    $region89: #{tpu_custom_call.1} parent=1 // pred_fallthru
      _
    // Predicated region
    $region90: #{tpu_custom_call.1} parent=1 // pred_check
      _
    $region91: #{tpu_custom_call.1} parent=1 // pred_check_branch
      %179 = sbr.rel (0) target = $region93
    $region92: #{tpu_custom_call.1} parent=1 // pred_region
      %180 = dma.done [#allocation14], 512
    $region93: #{tpu_custom_call.1} parent=1 // pred_fallthru
      _
    // Predicated region
    $region94: #{tpu_custom_call.1} parent=1 // pred_check
      _
    $region95: #{tpu_custom_call.1} parent=1 // pred_check_branch
      %182 = sbr.rel (0) target = $region97
    $region96: #{tpu_custom_call.1} parent=1 // pred_region
      %183 = dma.done [#allocation14], 512
    $region97: #{tpu_custom_call.1} parent=1 // pred_fallthru
      _
    // Predicated region
    $region98: #{tpu_custom_call.1} parent=1 // pred_check
      _
    $region99: #{tpu_custom_call.1} parent=1 // pred_check_branch
      %185 = sbr.rel (0) target = $region101
    $region100: #{tpu_custom_call.1} parent=1 // pred_region
      %186 = dma.done [#allocation17], 512
    $region101: #{tpu_custom_call.1} parent=1 // pred_fallthru
      _
    // Predicated region
    $region102: #{tpu_custom_call.1} parent=1 // pred_check
      _
    $region103: #{tpu_custom_call.1} parent=1 // pred_check_branch
      %188 = sbr.rel (0) target = $region105
    $region104: #{tpu_custom_call.1} parent=1 // pred_region
      %189 = dma.done [#allocation17], 512
    $region105: #{tpu_custom_call.1} parent=1 // pred_fallthru
      _
    // Predicated region
    $region106: #{tpu_custom_call.1} parent=1 // pred_check
      _
    $region107: #{tpu_custom_call.1} parent=1 // pred_check_branch
      %191 = sbr.rel (0) target = $region109
    $region108: #{tpu_custom_call.1} parent=1 // pred_region
      %192 = dma.done [#allocation20], 512
    $region109: #{tpu_custom_call.1} parent=1 // pred_fallthru
      _
    %p194 = scmp.eq.s32.totalorder 0, 0
    // Predicated region
    $region110: #{tpu_custom_call.1} parent=1 // pred_check
      %p195 = pneg %p194
    $region111: #{tpu_custom_call.1} parent=1 // pred_check_branch
      %197 = sbr.rel (%p195) target = $region113
    $region112: #{tpu_custom_call.1} parent=1 // pred_region
      %vm198 = vcmask 254976
      %199 = vst.msk [vmem:[#allocation2] sm:$0x3] %vm198, 0.0
      %200 = vst.msk [vmem:[#allocation3] sm:$0x3] %vm198, 0.0
    $region113: #{tpu_custom_call.1} parent=1 // pred_fallthru
      _
    %v201 = vld [vmem:[%s2] sm:$0xf]
    %v202 = vld [vmem:[#allocation4] sm:$0xf]
    %v203 = vld [vmem:[#allocation4 + $0x4] sm:$0xf]
    %v204 = vadd.bf16 %v202, %v201
    %v205 = vadd.bf16 %v203, %v201
    %v206 = vld [vmem:[#allocation7] sm:$0xf]
    %v207 = vld [vmem:[#allocation7 + $0x4] sm:$0xf]
    %v208 = vadd.bf16 %v206, %v201
    %v209 = vadd.bf16 %v207, %v201
    %v210 = vld [vmem:[#allocation9] sm:$0xf]
    %v211 = vld [vmem:[#allocation9 + $0x4] sm:$0xf]
    %v212 = vld [vmem:[#allocation9 + $0x8] sm:$0xf]
    %v213 = vld [vmem:[#allocation9 + $0xc] sm:$0xf]
    %v216 = vunpack.c.l.b16 %v204
    %v217 = vunpack.c.l.b16 %v205
    %v218 = vpack.c.b16 %v217, %v216
    %v223 = vunpack.c.l.b16 %v210
    %v224 = vunpack.c.l.b16 %v211
    %v225 = vunpack.c.l.b16 %v212
    %v226 = vunpack.c.l.b16 %v213
    %v227 = vpack.c.b16 %v224, %v223
    %v228 = vpack.c.b16 %v226, %v225
    %vm231 = vcmask 261120
    %v233 = vsel %vm231, %v218, 0
    %235 = vmatprep.subr.bf16.mxu0 0
    %236 = vmatpush1.bf16.msra.mxu0 0
    %237 = vmatprep.subr.bf16.mxu0 0
    %238 = vmatpush1.bf16.msra.mxu0 0
    %239 = vmatprep.subr.bf16.mxu0 0
    %240 = vmatpush1.bf16.msra.mxu0 0
    %241 = vmatprep.subr.bf16.mxu0 0
    %242 = vmatpush1.bf16.msra.mxu0 0
    %243 = vmatprep.subr.bf16.mxu0 0
    %244 = vmatpush1.bf16.msra.mxu0 0
    %245 = vmatprep.subr.bf16.mxu0 0
    %246 = vmatpush1.bf16.msra.mxu0 0
    %247 = vmatprep.subr.bf16.mxu0 0
    %248 = vmatpush1.bf16.msra.mxu0 %v228
    %249 = vmatprep.subr.bf16.mxu0 0
    %250 = vmatpush1.bf16.msra.mxu0 %v227
    %251 = vmatprep.subr.bf16.mxu0 0
    %252 = vmatpush2.bf16.msra.mxu0 0
    %253 = vmatprep.subr.bf16.mxu0 0
    %254 = vmatpush2.bf16.msra.mxu0 0
    %255 = vmatprep.subr.bf16.mxu0 0
    %256 = vmatpush2.bf16.msra.mxu0 0
    %257 = vmatprep.subr.bf16.mxu0 0
    %258 = vmatpush2.bf16.msra.mxu0 0
    %259 = vmatprep.subr.bf16.mxu0 0
    %260 = vmatpush2.bf16.msra.mxu0 0
    %261 = vmatprep.subr.bf16.mxu0 0
    %262 = vmatpush2.bf16.msra.mxu0 0
    %263 = vmatprep.subr.bf16.mxu0 0
    %264 = vmatpush2.bf16.msra.mxu0 0
    %265 = vmatprep.subr.bf16.mxu0 0
    %266 = vmatpush2.bf16.msra.mxu0 0
    %267 = vmatprep.mubr.bf16.mxu0 0
    %268 = vmatmul.mubr.bf16.gmra.mxu0 %v233
    %v269 = vpop.f32.mrf.mxu0
    %v270 = vadd.f32 0.0, %v269
    %v271 = vpop.f32.mrf.mxu0
    %v272 = vpop.f32.mrf.mxu0
    %v273 = vadd.f32 0.0, %v272
    %v274 = vpop.f32.mrf.mxu0
    %275 = vdwg.mxu0
    %v276 = vld [vmem:[#allocation10] sm:$0xf]
    %v277 = vld [vmem:[#allocation10 + $0x4] sm:$0xf]
    %v278 = vld [vmem:[#allocation10 + $0x8] sm:$0xf]
    %v279 = vld [vmem:[#allocation10 + $0xc] sm:$0xf]
    %v282 = vunpack.c.l.b16 %v208
    %v283 = vunpack.c.l.b16 %v209
    %v284 = vpack.c.b16 %v283, %v282
    %v289 = vunpack.c.l.b16 %v276
    %v290 = vunpack.c.l.b16 %v277
    %v291 = vunpack.c.l.b16 %v278
    %v292 = vunpack.c.l.b16 %v279
    %v293 = vpack.c.b16 %v290, %v289
    %v294 = vpack.c.b16 %v292, %v291
    %v298 = vsel %vm231, %v284, 0
    %300 = vmatprep.subr.bf16.mxu0 0
    %301 = vmatpush1.bf16.msra.mxu0 0
    %302 = vmatprep.subr.bf16.mxu0 0
    %303 = vmatpush1.bf16.msra.mxu0 0
    %304 = vmatprep.subr.bf16.mxu0 0
    %305 = vmatpush1.bf16.msra.mxu0 0
    %306 = vmatprep.subr.bf16.mxu0 0
    %307 = vmatpush1.bf16.msra.mxu0 0
    %308 = vmatprep.subr.bf16.mxu0 0
    %309 = vmatpush1.bf16.msra.mxu0 0
    %310 = vmatprep.subr.bf16.mxu0 0
    %311 = vmatpush1.bf16.msra.mxu0 0
    %312 = vmatprep.subr.bf16.mxu0 0
    %313 = vmatpush1.bf16.msra.mxu0 %v294
    %314 = vmatprep.subr.bf16.mxu0 0
    %315 = vmatpush1.bf16.msra.mxu0 %v293
    %316 = vmatprep.subr.bf16.mxu0 0
    %317 = vmatpush2.bf16.msra.mxu0 0
    %318 = vmatprep.subr.bf16.mxu0 0
    %319 = vmatpush2.bf16.msra.mxu0 0
    %320 = vmatprep.subr.bf16.mxu0 0
    %321 = vmatpush2.bf16.msra.mxu0 0
    %322 = vmatprep.subr.bf16.mxu0 0
    %323 = vmatpush2.bf16.msra.mxu0 0
    %324 = vmatprep.subr.bf16.mxu0 0
    %325 = vmatpush2.bf16.msra.mxu0 0
    %326 = vmatprep.subr.bf16.mxu0 0
    %327 = vmatpush2.bf16.msra.mxu0 0
    %328 = vmatprep.subr.bf16.mxu0 0
    %329 = vmatpush2.bf16.msra.mxu0 0
    %330 = vmatprep.subr.bf16.mxu0 0
    %331 = vmatpush2.bf16.msra.mxu0 0
    %332 = vmatprep.mubr.bf16.mxu0 0
    %333 = vmatmul.mubr.bf16.gmra.mxu0 %v298
    %v334 = vpop.f32.mrf.mxu0
    %v335 = vadd.f32 0.0, %v334
    %v336 = vpop.f32.mrf.mxu0
    %v337 = vpop.f32.mrf.mxu0
    %v338 = vadd.f32 0.0, %v337
    %v339 = vpop.f32.mrf.mxu0
    %340 = vdwg.mxu0
    %v341 = vlaneseq
    %v342 = vand.u32 %v341, 127
    %s343 = smul.u32 0, 8
    %v344 = vstv %s343
    %v345 = vadd.s32 %v342, %v344
    %v346 = vld [vmem:[%s3] sm:$0x3]
    %347 = vset.pattern.permute.xlu0 0
    %348 = vperm.xlu0 %347, %v346
    %v349 = vpop.permute.xlu0 %348
    %vm350 = vcmp.lt.s32.totalorder %v345, %v349
    %v351 = vsel %vm350, 1, 0
    %v352 = vcvt.s32.f32 %v351
    %v353 = vlaneseq
    %v354 = vshrl.u32 %v353, 7
    %v355 = vsub.s32 0, %v354
    %v356 = vrot.slane %v352, %v355
    %358 = vbcast.lane.b32.xlu0 %v356, 256
    %v359 = vpop.permute.xlu0 %358
    %v360 = vlaneseq
    %v361 = vshrl.u32 %v360, 7
    %v362 = vsub.s32 1, %v361
    %v363 = vrot.slane %v352, %v362
    %365 = vbcast.lane.b32.xlu0 %v363, 256
    %v366 = vpop.permute.xlu0 %365
    %v367 = vld [vmem:[%s5] sm:$0x1]
    %v369 = vlaneseq
    %v370 = vshrl.u32 %v369, 7
    %v371 = vsub.s32 0, %v370
    %v372 = vrot.slane %v367, %v371
    %v374 = vadd.f32 %v270, %v372
    %v375 = vadd.f32 %v273, %v372
    %v376 = vmax.f32 %v374, 0.0
    %v377 = vmax.f32 %v375, 0.0
    %v378 = vmul.f32 %v376, %v359
    %v379 = vmul.f32 %v377, %v366
    %v380 = vld [vmem:[%s7] sm:$0x1]
    %v382 = vlaneseq
    %v383 = vshrl.u32 %v382, 7
    %v384 = vsub.s32 0, %v383
    %v385 = vrot.slane %v380, %v384
    %v387 = vadd.f32 %v335, %v385
    %v388 = vadd.f32 %v338, %v385
    %v389 = vmax.f32 %v387, 0.0
    %v390 = vmax.f32 %v388, 0.0
    %v391 = vmul.f32 %v389, %v359
    %v392 = vmul.f32 %v390, %v366
    %v393 = vld [vmem:[#allocation2] sm:$0x3]
    %v394 = vsel %vm231, %v378, -inf
    %v395 = vrot.slane %v394, 4
    %v396 = vmax.f32 %v394, %v395
    %v397 = vrot.slane %v396, 2
    %v398 = vmax.f32 %v396, %v397
    %v399 = vrot.slane %v398, 1
    %v400 = vmax.f32 %v398, %v399
    %v401 = vsel %vm231, %v379, -inf
    %v402 = vrot.slane %v401, 4
    %v403 = vmax.f32 %v401, %v402
    %v404 = vrot.slane %v403, 2
    %v405 = vmax.f32 %v403, %v404
    %v406 = vrot.slane %v405, 1
    %v407 = vmax.f32 %v405, %v406
    %vm410 = vcmask 1041409
    %v411 = vsel %vm410, %v407, %v400
    %v413 = vmax.f32 %v393, %v411
    %vm414 = vcmask 254976
    %415 = vst.msk [vmem:[#allocation2] sm:$0x3] %vm414, %v413
    %v416 = vld [vmem:[#allocation3] sm:$0x3]
    %v417 = vsel %vm231, %v391, -inf
    %v418 = vrot.slane %v417, 4
    %v419 = vmax.f32 %v417, %v418
    %v420 = vrot.slane %v419, 2
    %v421 = vmax.f32 %v419, %v420
    %v422 = vrot.slane %v421, 1
    %v423 = vmax.f32 %v421, %v422
    %v424 = vsel %vm231, %v392, -inf
    %v425 = vrot.slane %v424, 4
    %v426 = vmax.f32 %v424, %v425
    %v427 = vrot.slane %v426, 2
    %v428 = vmax.f32 %v426, %v427
    %v429 = vrot.slane %v428, 1
    %v430 = vmax.f32 %v428, %v429
    %v433 = vsel %vm410, %v430, %v423
    %v435 = vmax.f32 %v416, %v433
    %436 = vst.msk [vmem:[#allocation3] sm:$0x3] %vm414, %v435
    // Predicated region
    $region114: #{tpu_custom_call.1} parent=1 // pred_check
      %p437 = pneg %p194
    $region115: #{tpu_custom_call.1} parent=1 // pred_check_branch
      %439 = sbr.rel (%p437) target = $region117
    $region116: #{tpu_custom_call.1} parent=1 // pred_region
      %v440 = vld [vmem:[#allocation2] sm:$0x3]
      %v441 = vld [vmem:[#allocation3] sm:$0x3]
      %v442 = vld [vmem:[#allocation12] sm:$0xff]
      %v443 = vld [vmem:[#allocation12 + $0x8] sm:$0xff]
      %v444 = vld [vmem:[#allocation12 + $0x10] sm:$0xff]
      %v445 = vld [vmem:[#allocation12 + $0x18] sm:$0xff]
      %v446 = vld [vmem:[#allocation13] sm:$0xff]
      %v447 = vld [vmem:[#allocation13 + $0x8] sm:$0xff]
      %v448 = vld [vmem:[#allocation13 + $0x10] sm:$0xff]
      %v449 = vld [vmem:[#allocation13 + $0x18] sm:$0xff]
      %v451 = vsel %vm231, %v441, 0
      %453 = vmatprep.subr.mxu0 0.0
      %454 = vmatpush1.msra.mxu0 0.0
      %455 = vmatprep.subr.mxu0 0.0
      %456 = vmatpush1.msra.mxu0 0.0
      %457 = vmatprep.subr.mxu0 0.0
      %458 = vmatpush1.msra.mxu0 0.0
      %459 = vmatprep.subr.mxu0 0.0
      %460 = vmatpush1.msra.mxu0 0.0
      %461 = vmatprep.subr.mxu0 0.0
      %462 = vmatpush1.msra.mxu0 0.0
      %463 = vmatprep.subr.mxu0 0.0
      %464 = vmatpush1.msra.mxu0 0.0
      %465 = vmatprep.subr.mxu0 0.0
      %466 = vmatpush1.msra.mxu0 0.0
      %467 = vmatprep.subr.mxu0 0.0
      %468 = vmatpush1.msra.mxu0 0.0
      %469 = vmatprep.subr.mxu0 0.0
      %470 = vmatpush1.msra.mxu0 0.0
      %471 = vmatprep.subr.mxu0 0.0
      %472 = vmatpush1.msra.mxu0 0.0
      %473 = vmatprep.subr.mxu0 0.0
      %474 = vmatpush1.msra.mxu0 0.0
      %475 = vmatprep.subr.mxu0 0.0
      %476 = vmatpush1.msra.mxu0 0.0
      %477 = vmatprep.subr.mxu0 0.0
      %478 = vmatpush1.msra.mxu0 %v449
      %479 = vmatprep.subr.mxu0 0.0
      %480 = vmatpush1.msra.mxu0 %v448
      %481 = vmatprep.subr.mxu0 0.0
      %482 = vmatpush1.msra.mxu0 %v447
      %483 = vmatprep.subr.mxu0 0.0
      %484 = vmatpush1.msra.mxu0 %v446
      %485 = vmatprep.subr.mxu0 0.0
      %486 = vmatpush2.msra.mxu0 0.0
      %487 = vmatprep.subr.mxu0 0.0
      %488 = vmatpush2.msra.mxu0 0.0
      %489 = vmatprep.subr.mxu0 0.0
      %490 = vmatpush2.msra.mxu0 0.0
      %491 = vmatprep.subr.mxu0 0.0
      %492 = vmatpush2.msra.mxu0 0.0
      %493 = vmatprep.subr.mxu0 0.0
      %494 = vmatpush2.msra.mxu0 0.0
      %495 = vmatprep.subr.mxu0 0.0
      %496 = vmatpush2.msra.mxu0 0.0
      %497 = vmatprep.subr.mxu0 0.0
      %498 = vmatpush2.msra.mxu0 0.0
      %499 = vmatprep.subr.mxu0 0.0
      %500 = vmatpush2.msra.mxu0 0.0
      %501 = vmatprep.subr.mxu0 0.0
      %502 = vmatpush2.msra.mxu0 0.0
      %503 = vmatprep.subr.mxu0 0.0
      %504 = vmatpush2.msra.mxu0 0.0
      %505 = vmatprep.subr.mxu0 0.0
      %506 = vmatpush2.msra.mxu0 0.0
      %507 = vmatprep.subr.mxu0 0.0
      %508 = vmatpush2.msra.mxu0 0.0
      %509 = vmatprep.subr.mxu0 0.0
      %510 = vmatpush2.msra.mxu0 0.0
      %511 = vmatprep.subr.mxu0 0.0
      %512 = vmatpush2.msra.mxu0 0.0
      %513 = vmatprep.subr.mxu0 0.0
      %514 = vmatpush2.msra.mxu0 0.0
      %515 = vmatprep.subr.mxu0 0.0
      %516 = vmatpush2.msra.mxu0 0.0
      %517 = vmatprep.mubr.f32.mxu0 0.0
      %518 = vmatmul.mubr.f32.gmra.mxu0 %v451
      %v519 = vpop.f32.mrf.mxu0
      %v520 = vadd.f32 0.0, %v519
      %v521 = vpop.f32.mrf.mxu0
      %522 = vdwg.mxu0
      %v524 = vsel %vm231, %v440, 0
      %526 = vmatprep.subr.mxu0 0.0
      %527 = vmatpush1.msra.mxu0 0.0
      %528 = vmatprep.subr.mxu0 0.0
      %529 = vmatpush1.msra.mxu0 0.0
      %530 = vmatprep.subr.mxu0 0.0
      %531 = vmatpush1.msra.mxu0 0.0
      %532 = vmatprep.subr.mxu0 0.0
      %533 = vmatpush1.msra.mxu0 0.0
      %534 = vmatprep.subr.mxu0 0.0
      %535 = vmatpush1.msra.mxu0 0.0
      %536 = vmatprep.subr.mxu0 0.0
      %537 = vmatpush1.msra.mxu0 0.0
      %538 = vmatprep.subr.mxu0 0.0
      %539 = vmatpush1.msra.mxu0 0.0
      %540 = vmatprep.subr.mxu0 0.0
      %541 = vmatpush1.msra.mxu0 0.0
      %542 = vmatprep.subr.mxu0 0.0
      %543 = vmatpush1.msra.mxu0 0.0
      %544 = vmatprep.subr.mxu0 0.0
      %545 = vmatpush1.msra.mxu0 0.0
      %546 = vmatprep.subr.mxu0 0.0
      %547 = vmatpush1.msra.mxu0 0.0
      %548 = vmatprep.subr.mxu0 0.0
      %549 = vmatpush1.msra.mxu0 0.0
      %550 = vmatprep.subr.mxu0 0.0
      %551 = vmatpush1.msra.mxu0 %v445
      %552 = vmatprep.subr.mxu0 0.0
      %553 = vmatpush1.msra.mxu0 %v444
      %554 = vmatprep.subr.mxu0 0.0
      %555 = vmatpush1.msra.mxu0 %v443
      %556 = vmatprep.subr.mxu0 0.0
      %557 = vmatpush1.msra.mxu0 %v442
      %558 = vmatprep.subr.mxu0 0.0
      %559 = vmatpush2.msra.mxu0 0.0
      %560 = vmatprep.subr.mxu0 0.0
      %561 = vmatpush2.msra.mxu0 0.0
      %562 = vmatprep.subr.mxu0 0.0
      %563 = vmatpush2.msra.mxu0 0.0
      %564 = vmatprep.subr.mxu0 0.0
      %565 = vmatpush2.msra.mxu0 0.0
      %566 = vmatprep.subr.mxu0 0.0
      %567 = vmatpush2.msra.mxu0 0.0
      %568 = vmatprep.subr.mxu0 0.0
      %569 = vmatpush2.msra.mxu0 0.0
      %570 = vmatprep.subr.mxu0 0.0
      %571 = vmatpush2.msra.mxu0 0.0
      %572 = vmatprep.subr.mxu0 0.0
      %573 = vmatpush2.msra.mxu0 0.0
      %574 = vmatprep.subr.mxu0 0.0
      %575 = vmatpush2.msra.mxu0 0.0
      %576 = vmatprep.subr.mxu0 0.0
      %577 = vmatpush2.msra.mxu0 0.0
      %578 = vmatprep.subr.mxu0 0.0
      %579 = vmatpush2.msra.mxu0 0.0
      %580 = vmatprep.subr.mxu0 0.0
      %581 = vmatpush2.msra.mxu0 0.0
      %582 = vmatprep.subr.mxu0 0.0
      %583 = vmatpush2.msra.mxu0 0.0
      %584 = vmatprep.subr.mxu0 0.0
      %585 = vmatpush2.msra.mxu0 0.0
      %586 = vmatprep.subr.mxu0 0.0
      %587 = vmatpush2.msra.mxu0 0.0
      %588 = vmatprep.subr.mxu0 0.0
      %589 = vmatpush2.msra.mxu0 0.0
      %590 = vmatprep.mubr.f32.mxu0 0.0
      %591 = vmatmul.mubr.f32.gmra.mxu0 %v524
      %v592 = vpop.f32.mrf.mxu0
      %v593 = vadd.f32 %v520, %v592
      %v594 = vpop.f32.mrf.mxu0
      %595 = vdwg.mxu0
      %v596 = vld [vmem:[%s10] sm:$0x1]
      %v598 = vlaneseq
      %v599 = vshrl.u32 %v598, 7
      %v600 = vsub.s32 0, %v599
      %v601 = vrot.slane %v596, %v600
      %v603 = vadd.f32 %v593, %v601
      %v604 = vmax.f32 %v603, 0.0
      %v605 = vld [vmem:[#allocation15] sm:$0xff]
      %v606 = vld [vmem:[#allocation15 + $0x8] sm:$0xff]
      %v607 = vld [vmem:[#allocation15 + $0x10] sm:$0xff]
      %v608 = vld [vmem:[#allocation15 + $0x18] sm:$0xff]
      %v609 = vld [vmem:[#allocation16] sm:$0xff]
      %v610 = vld [vmem:[#allocation16 + $0x8] sm:$0xff]
      %v611 = vld [vmem:[#allocation16 + $0x10] sm:$0xff]
      %v612 = vld [vmem:[#allocation16 + $0x18] sm:$0xff]
      %613 = vmatprep.subr.mxu0 0.0
      %614 = vmatpush1.msra.mxu0 0.0
      %615 = vmatprep.subr.mxu0 0.0
      %616 = vmatpush1.msra.mxu0 0.0
      %617 = vmatprep.subr.mxu0 0.0
      %618 = vmatpush1.msra.mxu0 0.0
      %619 = vmatprep.subr.mxu0 0.0
      %620 = vmatpush1.msra.mxu0 0.0
      %621 = vmatprep.subr.mxu0 0.0
      %622 = vmatpush1.msra.mxu0 0.0
      %623 = vmatprep.subr.mxu0 0.0
      %624 = vmatpush1.msra.mxu0 0.0
      %625 = vmatprep.subr.mxu0 0.0
      %626 = vmatpush1.msra.mxu0 0.0
      %627 = vmatprep.subr.mxu0 0.0
      %628 = vmatpush1.msra.mxu0 0.0
      %629 = vmatprep.subr.mxu0 0.0
      %630 = vmatpush1.msra.mxu0 0.0
      %631 = vmatprep.subr.mxu0 0.0
      %632 = vmatpush1.msra.mxu0 0.0
      %633 = vmatprep.subr.mxu0 0.0
      %634 = vmatpush1.msra.mxu0 0.0
      %635 = vmatprep.subr.mxu0 0.0
      %636 = vmatpush1.msra.mxu0 0.0
      %637 = vmatprep.subr.mxu0 0.0
      %638 = vmatpush1.msra.mxu0 %v612
      %639 = vmatprep.subr.mxu0 0.0
      %640 = vmatpush1.msra.mxu0 %v611
      %641 = vmatprep.subr.mxu0 0.0
      %642 = vmatpush1.msra.mxu0 %v610
      %643 = vmatprep.subr.mxu0 0.0
      %644 = vmatpush1.msra.mxu0 %v609
      %645 = vmatprep.subr.mxu0 0.0
      %646 = vmatpush2.msra.mxu0 0.0
      %647 = vmatprep.subr.mxu0 0.0
      %648 = vmatpush2.msra.mxu0 0.0
      %649 = vmatprep.subr.mxu0 0.0
      %650 = vmatpush2.msra.mxu0 0.0
      %651 = vmatprep.subr.mxu0 0.0
      %652 = vmatpush2.msra.mxu0 0.0
      %653 = vmatprep.subr.mxu0 0.0
      %654 = vmatpush2.msra.mxu0 0.0
      %655 = vmatprep.subr.mxu0 0.0
      %656 = vmatpush2.msra.mxu0 0.0
      %657 = vmatprep.subr.mxu0 0.0
      %658 = vmatpush2.msra.mxu0 0.0
      %659 = vmatprep.subr.mxu0 0.0
      %660 = vmatpush2.msra.mxu0 0.0
      %661 = vmatprep.subr.mxu0 0.0
      %662 = vmatpush2.msra.mxu0 0.0
      %663 = vmatprep.subr.mxu0 0.0
      %664 = vmatpush2.msra.mxu0 0.0
      %665 = vmatprep.subr.mxu0 0.0
      %666 = vmatpush2.msra.mxu0 0.0
      %667 = vmatprep.subr.mxu0 0.0
      %668 = vmatpush2.msra.mxu0 0.0
      %669 = vmatprep.subr.mxu0 0.0
      %670 = vmatpush2.msra.mxu0 0.0
      %671 = vmatprep.subr.mxu0 0.0
      %672 = vmatpush2.msra.mxu0 0.0
      %673 = vmatprep.subr.mxu0 0.0
      %674 = vmatpush2.msra.mxu0 0.0
      %675 = vmatprep.subr.mxu0 0.0
      %676 = vmatpush2.msra.mxu0 0.0
      %677 = vmatprep.mubr.f32.mxu0 0.0
      %678 = vmatmul.mubr.f32.gmra.mxu0 %v451
      %v679 = vpop.f32.mrf.mxu0
      %v680 = vadd.f32 0.0, %v679
      %v681 = vpop.f32.mrf.mxu0
      %682 = vdwg.mxu0
      %683 = vmatprep.subr.mxu0 0.0
      %684 = vmatpush1.msra.mxu0 0.0
      %685 = vmatprep.subr.mxu0 0.0
      %686 = vmatpush1.msra.mxu0 0.0
      %687 = vmatprep.subr.mxu0 0.0
      %688 = vmatpush1.msra.mxu0 0.0
      %689 = vmatprep.subr.mxu0 0.0
      %690 = vmatpush1.msra.mxu0 0.0
      %691 = vmatprep.subr.mxu0 0.0
      %692 = vmatpush1.msra.mxu0 0.0
      %693 = vmatprep.subr.mxu0 0.0
      %694 = vmatpush1.msra.mxu0 0.0
      %695 = vmatprep.subr.mxu0 0.0
      %696 = vmatpush1.msra.mxu0 0.0
      %697 = vmatprep.subr.mxu0 0.0
      %698 = vmatpush1.msra.mxu0 0.0
      %699 = vmatprep.subr.mxu0 0.0
      %700 = vmatpush1.msra.mxu0 0.0
      %701 = vmatprep.subr.mxu0 0.0
      %702 = vmatpush1.msra.mxu0 0.0
      %703 = vmatprep.subr.mxu0 0.0
      %704 = vmatpush1.msra.mxu0 0.0
      %705 = vmatprep.subr.mxu0 0.0
      %706 = vmatpush1.msra.mxu0 0.0
      %707 = vmatprep.subr.mxu0 0.0
      %708 = vmatpush1.msra.mxu0 %v608
      %709 = vmatprep.subr.mxu0 0.0
      %710 = vmatpush1.msra.mxu0 %v607
      %711 = vmatprep.subr.mxu0 0.0
      %712 = vmatpush1.msra.mxu0 %v606
      %713 = vmatprep.subr.mxu0 0.0
      %714 = vmatpush1.msra.mxu0 %v605
      %715 = vmatprep.subr.mxu0 0.0
      %716 = vmatpush2.msra.mxu0 0.0
      %717 = vmatprep.subr.mxu0 0.0
      %718 = vmatpush2.msra.mxu0 0.0
      %719 = vmatprep.subr.mxu0 0.0
      %720 = vmatpush2.msra.mxu0 0.0
      %721 = vmatprep.subr.mxu0 0.0
      %722 = vmatpush2.msra.mxu0 0.0
      %723 = vmatprep.subr.mxu0 0.0
      %724 = vmatpush2.msra.mxu0 0.0
      %725 = vmatprep.subr.mxu0 0.0
      %726 = vmatpush2.msra.mxu0 0.0
      %727 = vmatprep.subr.mxu0 0.0
      %728 = vmatpush2.msra.mxu0 0.0
      %729 = vmatprep.subr.mxu0 0.0
      %730 = vmatpush2.msra.mxu0 0.0
      %731 = vmatprep.subr.mxu0 0.0
      %732 = vmatpush2.msra.mxu0 0.0
      %733 = vmatprep.subr.mxu0 0.0
      %734 = vmatpush2.msra.mxu0 0.0
      %735 = vmatprep.subr.mxu0 0.0
      %736 = vmatpush2.msra.mxu0 0.0
      %737 = vmatprep.subr.mxu0 0.0
      %738 = vmatpush2.msra.mxu0 0.0
      %739 = vmatprep.subr.mxu0 0.0
      %740 = vmatpush2.msra.mxu0 0.0
      %741 = vmatprep.subr.mxu0 0.0
      %742 = vmatpush2.msra.mxu0 0.0
      %743 = vmatprep.subr.mxu0 0.0
      %744 = vmatpush2.msra.mxu0 0.0
      %745 = vmatprep.subr.mxu0 0.0
      %746 = vmatpush2.msra.mxu0 0.0
      %747 = vmatprep.mubr.f32.mxu0 0.0
      %748 = vmatmul.mubr.f32.gmra.mxu0 %v524
      %v749 = vpop.f32.mrf.mxu0
      %v750 = vadd.f32 %v680, %v749
      %v751 = vpop.f32.mrf.mxu0
      %752 = vdwg.mxu0
      %v753 = vld [vmem:[#allocation18] sm:$0xff]
      %v754 = vld [vmem:[#allocation18 + $0x8] sm:$0xff]
      %v755 = vld [vmem:[#allocation18 + $0x10] sm:$0xff]
      %v756 = vld [vmem:[#allocation18 + $0x18] sm:$0xff]
      %v758 = vsel %vm231, %v604, 0
      %760 = vmatprep.subr.mxu0 0.0
      %761 = vmatpush1.msra.mxu0 0.0
      %762 = vmatprep.subr.mxu0 0.0
      %763 = vmatpush1.msra.mxu0 0.0
      %764 = vmatprep.subr.mxu0 0.0
      %765 = vmatpush1.msra.mxu0 0.0
      %766 = vmatprep.subr.mxu0 0.0
      %767 = vmatpush1.msra.mxu0 0.0
      %768 = vmatprep.subr.mxu0 0.0
      %769 = vmatpush1.msra.mxu0 0.0
      %770 = vmatprep.subr.mxu0 0.0
      %771 = vmatpush1.msra.mxu0 0.0
      %772 = vmatprep.subr.mxu0 0.0
      %773 = vmatpush1.msra.mxu0 0.0
      %774 = vmatprep.subr.mxu0 0.0
      %775 = vmatpush1.msra.mxu0 0.0
      %776 = vmatprep.subr.mxu0 0.0
      %777 = vmatpush1.msra.mxu0 0.0
      %778 = vmatprep.subr.mxu0 0.0
      %779 = vmatpush1.msra.mxu0 0.0
      %780 = vmatprep.subr.mxu0 0.0
      %781 = vmatpush1.msra.mxu0 0.0
      %782 = vmatprep.subr.mxu0 0.0
      %783 = vmatpush1.msra.mxu0 0.0
      %784 = vmatprep.subr.mxu0 0.0
      %785 = vmatpush1.msra.mxu0 %v756
      %786 = vmatprep.subr.mxu0 0.0
      %787 = vmatpush1.msra.mxu0 %v755
      %788 = vmatprep.subr.mxu0 0.0
      %789 = vmatpush1.msra.mxu0 %v754
      %790 = vmatprep.subr.mxu0 0.0
      %791 = vmatpush1.msra.mxu0 %v753
      %792 = vmatprep.subr.mxu0 0.0
      %793 = vmatpush2.msra.mxu0 0.0
      %794 = vmatprep.subr.mxu0 0.0
      %795 = vmatpush2.msra.mxu0 0.0
      %796 = vmatprep.subr.mxu0 0.0
      %797 = vmatpush2.msra.mxu0 0.0
      %798 = vmatprep.subr.mxu0 0.0
      %799 = vmatpush2.msra.mxu0 0.0
      %800 = vmatprep.subr.mxu0 0.0
      %801 = vmatpush2.msra.mxu0 0.0
      %802 = vmatprep.subr.mxu0 0.0
      %803 = vmatpush2.msra.mxu0 0.0
      %804 = vmatprep.subr.mxu0 0.0
      %805 = vmatpush2.msra.mxu0 0.0
      %806 = vmatprep.subr.mxu0 0.0
      %807 = vmatpush2.msra.mxu0 0.0
      %808 = vmatprep.subr.mxu0 0.0
      %809 = vmatpush2.msra.mxu0 0.0
      %810 = vmatprep.subr.mxu0 0.0
      %811 = vmatpush2.msra.mxu0 0.0
      %812 = vmatprep.subr.mxu0 0.0
      %813 = vmatpush2.msra.mxu0 0.0
      %814 = vmatprep.subr.mxu0 0.0
      %815 = vmatpush2.msra.mxu0 0.0
      %816 = vmatprep.subr.mxu0 0.0
      %817 = vmatpush2.msra.mxu0 0.0
      %818 = vmatprep.subr.mxu0 0.0
      %819 = vmatpush2.msra.mxu0 0.0
      %820 = vmatprep.subr.mxu0 0.0
      %821 = vmatpush2.msra.mxu0 0.0
      %822 = vmatprep.subr.mxu0 0.0
      %823 = vmatpush2.msra.mxu0 0.0
      %824 = vmatprep.mubr.f32.mxu0 0.0
      %825 = vmatmul.mubr.f32.gmra.mxu0 %v758
      %v826 = vpop.f32.mrf.mxu0
      %v827 = vadd.f32 0.0, %v826
      %v828 = vpop.f32.mrf.mxu0
      %829 = vdwg.mxu0
      %v830 = vadd.f32 %v750, %v827
      %v831 = vld [vmem:[%s14] sm:$0x1]
      %v833 = vlaneseq
      %v834 = vshrl.u32 %v833, 7
      %v835 = vsub.s32 0, %v834
      %v836 = vrot.slane %v831, %v835
      %v838 = vadd.f32 %v830, %v836
      %v839 = vmax.f32 %v838, 0.0
      %v840 = vld [vmem:[#allocation19] sm:$0xff]
      %v841 = vld [vmem:[#allocation19 + $0x8] sm:$0xff]
      %v842 = vld [vmem:[#allocation19 + $0x10] sm:$0xff]
      %v843 = vld [vmem:[#allocation19 + $0x18] sm:$0xff]
      %v844 = vld [vmem:[%s16] sm:$0x1]
      %v846 = vlaneseq
      %v847 = vshrl.u32 %v846, 7
      %v848 = vsub.s32 0, %v847
      %v849 = vrot.slane %v844, %v848
      %v852 = vsel %vm231, %v839, 0
      %854 = vmatprep.subr.mxu0 0.0
      %855 = vmatpush1.msra.mxu0 0.0
      %856 = vmatprep.subr.mxu0 0.0
      %857 = vmatpush1.msra.mxu0 0.0
      %858 = vmatprep.subr.mxu0 0.0
      %859 = vmatpush1.msra.mxu0 0.0
      %860 = vmatprep.subr.mxu0 0.0
      %861 = vmatpush1.msra.mxu0 0.0
      %862 = vmatprep.subr.mxu0 0.0
      %863 = vmatpush1.msra.mxu0 0.0
      %864 = vmatprep.subr.mxu0 0.0
      %865 = vmatpush1.msra.mxu0 0.0
      %866 = vmatprep.subr.mxu0 0.0
      %867 = vmatpush1.msra.mxu0 0.0
      %868 = vmatprep.subr.mxu0 0.0
      %869 = vmatpush1.msra.mxu0 0.0
      %870 = vmatprep.subr.mxu0 0.0
      %871 = vmatpush1.msra.mxu0 0.0
      %872 = vmatprep.subr.mxu0 0.0
      %873 = vmatpush1.msra.mxu0 0.0
      %874 = vmatprep.subr.mxu0 0.0
      %875 = vmatpush1.msra.mxu0 0.0
      %876 = vmatprep.subr.mxu0 0.0
      %877 = vmatpush1.msra.mxu0 0.0
      %878 = vmatprep.subr.mxu0 0.0
      %879 = vmatpush1.msra.mxu0 %v843
      %880 = vmatprep.subr.mxu0 0.0
      %881 = vmatpush1.msra.mxu0 %v842
      %882 = vmatprep.subr.mxu0 0.0
      %883 = vmatpush1.msra.mxu0 %v841
      %884 = vmatprep.subr.mxu0 0.0
      %885 = vmatpush1.msra.mxu0 %v840
      %886 = vmatprep.subr.mxu0 0.0
      %887 = vmatpush2.msra.mxu0 0.0
      %888 = vmatprep.subr.mxu0 0.0
      %889 = vmatpush2.msra.mxu0 0.0
      %890 = vmatprep.subr.mxu0 0.0
      %891 = vmatpush2.msra.mxu0 0.0
      %892 = vmatprep.subr.mxu0 0.0
      %893 = vmatpush2.msra.mxu0 0.0
      %894 = vmatprep.subr.mxu0 0.0
      %895 = vmatpush2.msra.mxu0 0.0
      %896 = vmatprep.subr.mxu0 0.0
      %897 = vmatpush2.msra.mxu0 0.0
      %898 = vmatprep.subr.mxu0 0.0
      %899 = vmatpush2.msra.mxu0 0.0
      %900 = vmatprep.subr.mxu0 0.0
      %901 = vmatpush2.msra.mxu0 0.0
      %902 = vmatprep.subr.mxu0 0.0
      %903 = vmatpush2.msra.mxu0 0.0
      %904 = vmatprep.subr.mxu0 0.0
      %905 = vmatpush2.msra.mxu0 0.0
      %906 = vmatprep.subr.mxu0 0.0
      %907 = vmatpush2.msra.mxu0 0.0
      %908 = vmatprep.subr.mxu0 0.0
      %909 = vmatpush2.msra.mxu0 0.0
      %910 = vmatprep.subr.mxu0 0.0
      %911 = vmatpush2.msra.mxu0 0.0
      %912 = vmatprep.subr.mxu0 0.0
      %913 = vmatpush2.msra.mxu0 0.0
      %914 = vmatprep.subr.mxu0 0.0
      %915 = vmatpush2.msra.mxu0 0.0
      %916 = vmatprep.subr.mxu0 0.0
      %917 = vmatpush2.msra.mxu0 0.0
      %918 = vmatprep.mubr.f32.mxu0 0.0
      %919 = vmatmul.mubr.f32.gmra.mxu0 %v852
      %v920 = vpop.f32.mrf.mxu0
      %v921 = vadd.f32 %v849, %v920
      %v922 = vpop.f32.mrf.mxu0
      %923 = vdwg.mxu0
      %924 = vst [vmem:[#allocation21] sm:$0x3] %v921
    $region117: #{tpu_custom_call.1} parent=1 // pred_fallthru
      _
    // Predicated region
    $region118: #{tpu_custom_call.1} parent=1 // pred_check
      _
    $region119: #{tpu_custom_call.1} parent=1 // pred_check_branch
      %926 = sbr.rel (0) target = $region121
    $region120: #{tpu_custom_call.1} parent=1 // pred_region
      %s928 = ssub.s32 32, 32
      %929 = vsyncadd [#allocation6], %s928
      %s931 = sshll.u32 [#allocation21], 4
      %s932 = int_to_ptr.vmem [resolvable:$true] %s931
      %934 = dma.vmem_to_hbm [thread:$0]  %s932, 32, %s17, [#allocation6]
    $region121: #{tpu_custom_call.1} parent=1 // pred_fallthru
      _
    // Predicated region
    $region122: #{tpu_custom_call.1} parent=1 // pred_check
      _
    $region123: #{tpu_custom_call.1} parent=1 // pred_check_branch
      %936 = sbr.rel (0) target = $region125
    $region124: #{tpu_custom_call.1} parent=1 // pred_region
      %937 = dma.done [#allocation6], 32
    $region125: #{tpu_custom_call.1} parent=1 // pred_fallthru
      _
    %938 = vsyncpa [#allocation5], 1
    %939 = vsyncpa [#allocation8], 1
    %940 = vsyncpa [#allocation11], 1
    %941 = vsyncpa [#allocation14], 1
    %942 = vsyncpa [#allocation17], 1
    %943 = vsyncpa [#allocation20], 1
    %944 = vsyncpa [#allocation6], 1

</llo_original>
